<compile_context>
chip_gen: v5e
topology: v5e:2x2
jax: 0.10.0
libtpu: 0.0.40
codegen_flags: <defaults>
</compile_context>

<pallas_src>
import functools

import jax
import jax.numpy as jnp
from jax.experimental import pallas as pl
from jax.experimental.pallas import tpu as pltpu

LABEL_EMB = 2
EPOCH_EMB = 5
NUM_LABEL_EMB = 2
NUM_EPOCH_EMB = 101
NUM_FC = 20
FEAT_DIM = LABEL_EMB + EPOCH_EMB + 2  # = 9

LANE = 128
TB_MAX = 2048   # max batch-tile width (lanes)


# --------------------------------------------------------------------------
# Pallas kernel: fused RNN step + fc1/tanh + fc2/sigmoid, batch on lanes
# --------------------------------------------------------------------------
def mentornet_kernel(s_ref, x_ref, w_ref, o_ref):
    """One batch tile.

    s_ref : (8,)  SMEM scalars:
              0: W_ih_fwd[0,0]  1: W_ih_fwd[0,1]  2: b_ih_fwd + b_hh_fwd
              3: W_ih_rev[0,0]  4: W_ih_rev[0,1]  5: b_ih_rev + b_hh_rev
              6: fc2 bias       7: unused
    x_ref : (3, TB)  row 0 = loss, row 1 = loss_diff, row 2 = v_label (float)
    w_ref : (20, 8) packed weights:
              col 0 = (E1[1]-E1[0]) @ W1_label               (label delta)
              col 1 = fc1_b + epoch_emb @ W1_epoch + E1[0] @ W1_label
              col 2 = fc2 weight (20,)
              col 3 = fc1 weight row for the rnn-forward feature
              col 4 = fc1 weight row for the rnn-reverse feature
              cols 5..7 unused padding
    o_ref : (1, TB)  sigmoid output
    """
    loss = x_ref[0:1, :]          # (1, TB)
    ldif = x_ref[1:2, :]          # (1, TB)
    lab = x_ref[2:3, :]           # (1, TB)
    w = w_ref[...]                # (20, 8)

    # Bidirectional nn.RNN, seq_len=1, h0=0  ->  h_dir = tanh(W_ih x + b_ih + b_hh)
    h_f = jnp.tanh(s_ref[0] * loss + s_ref[1] * ldif + s_ref[2])   # (1, TB)
    h_r = jnp.tanh(s_ref[3] * loss + s_ref[4] * ldif + s_ref[5])   # (1, TB)

    # fc1 over the virtual concat [label_emb | epoch_emb | rnn_out]; epoch and
    # label-base terms are folded into the bias column, the label reduces to
    # one broadcast FMA (v_label in {0, 1}).
    pre = (w[:, 3:4] * h_f
           + w[:, 4:5] * h_r
           + w[:, 0:1] * lab
           + w[:, 1:2])                                            # (20, TB)
    h = jnp.tanh(pre)

    # fc2: K=20 contraction as a sublane reduction, then sigmoid.
    logits = jnp.sum(w[:, 2:3] * h, axis=0, keepdims=True) + s_ref[6]  # (1, TB)
    # sigmoid via tanh: numerically stable, keeps the transcendental on EUP.
    o_ref[...] = 0.5 * (jnp.tanh(0.5 * logits) + 1.0)


def _round_up(x, m):
    return ((x + m - 1) // m) * m


@functools.partial(jax.jit, static_argnames=("total_epoch", "epoch"))
def mentornet_forward(params, v_label, total_epoch, epoch, loss, loss_diff):
    """Pallas implementation of MentorNet_arch.forward."""
    B = loss.shape[0]

    # ---- batch tiling: lane-aligned; keep >= 2 grid steps when batch allows
    if B <= LANE:
        tb = LANE
    elif B <= 2 * TB_MAX:
        tb = _round_up(-(-B // 2), LANE)      # split in two (v7x megacore)
    else:
        tb = TB_MAX
    b_pad = _round_up(B, tb)
    grid = b_pad // tb

    # ---- fold per-call constants / pack weights (plain JAX glue) ----
    w1 = params["fc1_w"].T                                    # (9, 20)
    epoch_idx = (epoch * 100) // total_epoch                  # python int (static)

    lwd = (params["E1"][1] - params["E1"][0]) @ w1[0:2, :]    # (20,) label delta
    b1_eff = (params["fc1_b"]
              + params["E2"][epoch_idx] @ w1[2:7, :]
              + params["E1"][0] @ w1[0:2, :])                 # (20,) effective bias

    wslab = jnp.stack([lwd,
                       b1_eff,
                       params["fc2_w"][0, :],
                       w1[7, :],
                       w1[8, :]], axis=1).astype(jnp.float32)     # (20, 5)
    wslab = jnp.pad(wslab, ((0, 0), (0, 3)))                      # (20, 8)

    scalars = jnp.stack([
        params["rnn_w_ih_f"][0, 0], params["rnn_w_ih_f"][0, 1],
        params["rnn_b_ih_f"][0] + params["rnn_b_hh_f"][0],
        params["rnn_w_ih_r"][0, 0], params["rnn_w_ih_r"][0, 1],
        params["rnn_b_ih_r"][0] + params["rnn_b_hh_r"][0],
        params["fc2_b"][0],
        jnp.float32(0.0),
    ]).astype(jnp.float32)                                        # (8,)

    # ---- batch-on-lanes input slab, padded to the tile width ----
    x_all = jnp.stack([loss, loss_diff, v_label.astype(jnp.float32)],
                      axis=0).astype(jnp.float32)                 # (3, B)
    x_all = jnp.pad(x_all, ((0, 0), (0, b_pad - B)))              # (3, b_pad)

    out = pl.pallas_call(
        mentornet_kernel,
        out_shape=jax.ShapeDtypeStruct((1, b_pad), jnp.float32),
        grid=(grid,),
        in_specs=[
            pl.BlockSpec(memory_space=pltpu.MemorySpace.SMEM),   # scalars
            pl.BlockSpec((3, tb), lambda i: (0, i)),             # loss/loss_diff/label
            pl.BlockSpec((NUM_FC, 8), lambda i: (0, 0)),         # packed weights
        ],
        out_specs=pl.BlockSpec((1, tb), lambda i: (0, i)),
        compiler_params=pltpu.CompilerParams(
            dimension_semantics=("parallel",)),
    )(scalars, x_all, wslab)

    # NOTE: torch `.squeeze()` returns a 0-d tensor when B == 1; we keep (B,).
    return out[0, :B]


# --------------------------------------------------------------------------
# Deterministic parameter init (shapes match the torch module's __init__)
# --------------------------------------------------------------------------
def init_params(key):
    ks = jax.random.split(key, 12)
    return {
        "E1": jax.random.normal(ks[0], (NUM_LABEL_EMB, LABEL_EMB), jnp.float32),
        "E2": jax.random.normal(ks[1], (NUM_EPOCH_EMB, EPOCH_EMB), jnp.float32),
        # nn.RNN(input_size=2, hidden_size=1, bidirectional=True)
        "rnn_w_ih_f": 0.5 * jax.random.normal(ks[2], (1, 2), jnp.float32),
        "rnn_w_hh_f": 0.5 * jax.random.normal(ks[3], (1, 1), jnp.float32),
        "rnn_b_ih_f": 0.5 * jax.random.normal(ks[4], (1,), jnp.float32),
        "rnn_b_hh_f": 0.5 * jax.random.normal(ks[5], (1,), jnp.float32),
        "rnn_w_ih_r": 0.5 * jax.random.normal(ks[6], (1, 2), jnp.float32),
        "rnn_w_hh_r": 0.5 * jax.random.normal(ks[7], (1, 1), jnp.float32),
        "rnn_b_ih_r": 0.5 * jax.random.normal(ks[8], (1,), jnp.float32),
        "rnn_b_hh_r": 0.5 * jax.random.normal(ks[9], (1,), jnp.float32),
        # nn.Linear(9, 20), nn.Linear(20, 1)  (torch stores weight as (out, in))
        "fc1_w": 0.3 * jax.random.normal(ks[10], (NUM_FC, FEAT_DIM), jnp.float32),
        "fc1_b": jnp.zeros((NUM_FC,), jnp.float32),
        "fc2_w": 0.3 * jax.random.normal(ks[11], (1, NUM_FC), jnp.float32),
        "fc2_b": jnp.zeros((1,), jnp.float32),
    }


# Pure-JAX reference (mirrors the torch forward exactly) for a sanity check.
def reference_forward(params, v_label, total_epoch, epoch, loss, loss_diff):
    label_embed = params["E1"][v_label]                               # (B, 2)
    epoch_idx = (epoch * 100) // total_epoch
    epoch_embed = jnp.broadcast_to(params["E2"][epoch_idx][None, :],
                                   (loss.shape[0], EPOCH_EMB))        # (B, 5)
    x = jnp.stack([loss, loss_diff], axis=-1)                         # (B, 2)
    h_f = jnp.tanh(x @ params["rnn_w_ih_f"].T
                   + params["rnn_b_ih_f"] + params["rnn_b_hh_f"])     # (B, 1)
    h_r = jnp.tanh(x @ params["rnn_w_ih_r"].T
                   + params["rnn_b_ih_r"] + params["rnn_b_hh_r"])     # (B, 1)
    rnn_out = jnp.concatenate([h_f, h_r], axis=1)                     # (B, 2)
    feats = jnp.concatenate([label_embed, epoch_embed, rnn_out], 1)   # (B, 9)
    h = jnp.tanh(feats @ params["fc1_w"].T + params["fc1_b"])
    return jax.nn.sigmoid(h @ params["fc2_w"].T + params["fc2_b"])[:, 0]


if __name__ == "__main__":
    key = jax.random.PRNGKey(0)
    kp, kdata = jax.random.split(key)
    params = init_params(kp)

    total_epoch, epoch = 100, 37

    # B=8: single-tile path;  B=200: multi-tile (grid=2) + lane-padding path.
    for B in (8, 200):
        kb1, kb2, kb3 = jax.random.split(jax.random.fold_in(kdata, B), 3)
        v_label = jax.random.randint(kb1, (B,), 0, NUM_LABEL_EMB, dtype=jnp.int32)
        loss = jax.random.uniform(kb2, (B,), jnp.float32) * 3.0
        loss_diff = jax.random.normal(kb3, (B,), jnp.float32)

        out = mentornet_forward(params, v_label, total_epoch, epoch,
                                loss, loss_diff)
        out = jax.block_until_ready(out)
        ref = reference_forward(params, v_label, total_epoch, epoch,
                                loss, loss_diff)
        assert out.shape == (B,)
        assert jnp.allclose(out, ref, atol=1e-5, rtol=1e-5), (B, out, ref)

    print("KERNEL_OK")
</pallas_src>

<mosaic_0001>
module attributes {stable_mosaic.version = 11 : i64} {
  func.func @mentornet_kernel(%arg0: i32, %arg1: memref<8xf32, #tpu.memory_space<smem>>, %arg2: memref<3x128xf32, #tpu.memory_space<vmem>>, %arg3: memref<20x8xf32, #tpu.memory_space<vmem>>, %arg4: memref<1x128xf32, #tpu.memory_space<vmem>>) attributes {dimension_semantics = [#tpu.dimension_semantics<parallel>], iteration_bounds = array<i64: 1>, scalar_prefetch = 0 : i64, scratch_operands = 0 : i64, tpu.core_type = #tpu.core_type<tc>, window_params = [{transform_indices = @transform_0, window_bounds = array<i64: 8>}, {transform_indices = @transform_1, window_bounds = array<i64: 3, 128>}, {pipeline_mode = #tpu.pipeline_mode<synchronous>, transform_indices = @transform_2, window_bounds = array<i64: 20, 8>}, {transform_indices = @transform_3, window_bounds = array<i64: 1, 128>}]} {
    %c0 = arith.constant 0 : index
    %c0_0 = arith.constant 0 : index
    %0 = vector.load %arg2[%c0, %c0_0] : memref<3x128xf32, #tpu.memory_space<vmem>>, vector<1x128xf32>
    %c1 = arith.constant 1 : index
    %c0_1 = arith.constant 0 : index
    %1 = vector.load %arg2[%c1, %c0_1] : memref<3x128xf32, #tpu.memory_space<vmem>>, vector<1x128xf32>
    %c2 = arith.constant 2 : index
    %c0_2 = arith.constant 0 : index
    %2 = vector.load %arg2[%c2, %c0_2] : memref<3x128xf32, #tpu.memory_space<vmem>>, vector<1x128xf32>
    %c0_3 = arith.constant 0 : index
    %c0_4 = arith.constant 0 : index
    %3 = vector.load %arg3[%c0_3, %c0_4] : memref<20x8xf32, #tpu.memory_space<vmem>>, vector<20x8xf32>
    %c0_5 = arith.constant 0 : index
    %4 = memref.load %arg1[%c0_5] : memref<8xf32, #tpu.memory_space<smem>>
    %5 = vector.broadcast %4 : f32 to vector<1x128xf32>
    %6 = arith.mulf %5, %0 : vector<1x128xf32>
    %c1_6 = arith.constant 1 : index
    %7 = memref.load %arg1[%c1_6] : memref<8xf32, #tpu.memory_space<smem>>
    %8 = vector.broadcast %7 : f32 to vector<1x128xf32>
    %9 = arith.mulf %8, %1 : vector<1x128xf32>
    %10 = arith.addf %6, %9 : vector<1x128xf32>
    %c2_7 = arith.constant 2 : index
    %11 = memref.load %arg1[%c2_7] : memref<8xf32, #tpu.memory_space<smem>>
    %12 = vector.broadcast %11 : f32 to vector<1x128xf32>
    %13 = arith.addf %10, %12 : vector<1x128xf32>
    %14 = math.tanh %13 : vector<1x128xf32>
    %c3 = arith.constant 3 : index
    %15 = memref.load %arg1[%c3] : memref<8xf32, #tpu.memory_space<smem>>
    %16 = vector.broadcast %15 : f32 to vector<1x128xf32>
    %17 = arith.mulf %16, %0 : vector<1x128xf32>
    %c4 = arith.constant 4 : index
    %18 = memref.load %arg1[%c4] : memref<8xf32, #tpu.memory_space<smem>>
    %19 = vector.broadcast %18 : f32 to vector<1x128xf32>
    %20 = arith.mulf %19, %1 : vector<1x128xf32>
    %21 = arith.addf %17, %20 : vector<1x128xf32>
    %c5 = arith.constant 5 : index
    %22 = memref.load %arg1[%c5] : memref<8xf32, #tpu.memory_space<smem>>
    %23 = vector.broadcast %22 : f32 to vector<1x128xf32>
    %24 = arith.addf %21, %23 : vector<1x128xf32>
    %25 = math.tanh %24 : vector<1x128xf32>
    %26 = vector.extract_strided_slice %3 {offsets = [0, 3], sizes = [20, 1], strides = [1, 1]} : vector<20x8xf32> to vector<20x1xf32>
    %27 = vector.broadcast %26 : vector<20x1xf32> to vector<20x128xf32>
    %28 = vector.broadcast %14 : vector<1x128xf32> to vector<20x128xf32>
    %29 = arith.mulf %27, %28 : vector<20x128xf32>
    %30 = vector.extract_strided_slice %3 {offsets = [0, 4], sizes = [20, 1], strides = [1, 1]} : vector<20x8xf32> to vector<20x1xf32>
    %31 = vector.broadcast %30 : vector<20x1xf32> to vector<20x128xf32>
    %32 = vector.broadcast %25 : vector<1x128xf32> to vector<20x128xf32>
    %33 = arith.mulf %31, %32 : vector<20x128xf32>
    %34 = arith.addf %29, %33 : vector<20x128xf32>
    %35 = vector.extract_strided_slice %3 {offsets = [0, 0], sizes = [20, 1], strides = [1, 1]} : vector<20x8xf32> to vector<20x1xf32>
    %36 = vector.broadcast %35 : vector<20x1xf32> to vector<20x128xf32>
    %37 = vector.broadcast %2 : vector<1x128xf32> to vector<20x128xf32>
    %38 = arith.mulf %36, %37 : vector<20x128xf32>
    %39 = arith.addf %34, %38 : vector<20x128xf32>
    %40 = vector.extract_strided_slice %3 {offsets = [0, 1], sizes = [20, 1], strides = [1, 1]} : vector<20x8xf32> to vector<20x1xf32>
    %41 = vector.broadcast %40 : vector<20x1xf32> to vector<20x128xf32>
    %42 = arith.addf %39, %41 : vector<20x128xf32>
    %43 = math.tanh %42 : vector<20x128xf32>
    %44 = vector.extract_strided_slice %3 {offsets = [0, 2], sizes = [20, 1], strides = [1, 1]} : vector<20x8xf32> to vector<20x1xf32>
    %45 = vector.broadcast %44 : vector<20x1xf32> to vector<20x128xf32>
    %46 = arith.mulf %45, %43 : vector<20x128xf32>
    %cst = arith.constant dense<0.000000e+00> : vector<128xf32>
    %47 = vector.multi_reduction <add>, %46, %cst [0] : vector<20x128xf32> to vector<128xf32>
    %48 = vector.shape_cast %47 : vector<128xf32> to vector<1x128xf32>
    %c6 = arith.constant 6 : index
    %49 = memref.load %arg1[%c6] : memref<8xf32, #tpu.memory_space<smem>>
    %50 = vector.broadcast %49 : f32 to vector<1x128xf32>
    %51 = arith.addf %48, %50 : vector<1x128xf32>
    %cst_8 = arith.constant 5.000000e-01 : f32
    %52 = vector.broadcast %cst_8 : f32 to vector<1x128xf32>
    %53 = arith.mulf %52, %51 : vector<1x128xf32>
    %54 = math.tanh %53 : vector<1x128xf32>
    %cst_9 = arith.constant 1.000000e+00 : f32
    %55 = vector.broadcast %cst_9 : f32 to vector<1x128xf32>
    %56 = arith.addf %54, %55 : vector<1x128xf32>
    %cst_10 = arith.constant 5.000000e-01 : f32
    %57 = vector.broadcast %cst_10 : f32 to vector<1x128xf32>
    %58 = arith.mulf %57, %56 : vector<1x128xf32>
    %c0_11 = arith.constant 0 : index
    %c0_12 = arith.constant 0 : index
    %59 = vector.load %arg4[%c0_11, %c0_12] : memref<1x128xf32, #tpu.memory_space<vmem>>, vector<1x128xf32>
    tpu.vector_store %arg4[%c0_11, %c0_12], %58 {strides = array<i32>} : memref<1x128xf32, #tpu.memory_space<vmem>>, vector<1x128xf32>,
    return
  }
  func.func @transform_0(%arg0: i32) -> i32 {
    %c0_i32 = arith.constant 0 : i32
    %c0_i32_0 = arith.constant 0 : i32
    return %c0_i32 : i32
  }
  func.func @transform_1(%arg0: i32) -> (i32, i32) {
    %c0_i32 = arith.constant 0 : i32
    %c0_i32_0 = arith.constant 0 : i32
    return %c0_i32, %arg0 : i32, i32
  }
  func.func @transform_2(%arg0: i32) -> (i32, i32) {
    %c0_i32 = arith.constant 0 : i32
    %c0_i32_0 = arith.constant 0 : i32
    %c0_i32_1 = arith.constant 0 : i32
    return %c0_i32, %c0_i32_0 : i32, i32
  }
  func.func @transform_3(%arg0: i32) -> (i32, i32) {
    %c0_i32 = arith.constant 0 : i32
    %c0_i32_0 = arith.constant 0 : i32
    return %c0_i32, %arg0 : i32, i32
  }
}

</mosaic_0001>

<llo_original>
// kernel: mentornet_forward.1
$region0: #{mentornet_forward.1}
  #allocation0 [shape = 'u32[]', space=smem, size = 0x4, offset = 0x4, fixed_abs, tag = 'smem constant byte address 0x4 - core index']
  #allocation1 [shape = 'u32[72,128]{1,0:T(1,128)}', space=vmem, size = 0x9000, scoped, tag = 'internal scratch']
  %s0 = inlined_call_operand.vmem [shape: f32[8], index: 0, kind: input, shape index: {}]
  %s1 = inlined_call_operand.vmem [shape: f32[3,128], index: 1, kind: input, shape index: {}]
  %s2 = inlined_call_operand.vmem [shape: f32[20,8], index: 2, kind: input, shape index: {}]
  %s3 = inlined_call_operand.vmem [shape: f32[1,128], index: 3, kind: output, shape index: {}]
  %s4 = sld [smem:[#allocation0]]
  $region26: #{mentornet_forward.1} parent=0
    _
  %s6 = ssub.s32 1, %s4
  %s7 = scalar_select 0, %s6, %s4
  $region1: #{mentornet_forward.1} parent=0
    #allocation2 [shape = 'u8[512]{0}', space=smem, size = 0x200, scoped, tag = 'input window, operand 0, single buffered']
    #allocation3 [shape = 's32[1]{0}', space=sflag, size = 0x4, scoped, tag = 'scoped memory for mentornet_forward.1']
    %8 = vsyncpa [#allocation3], 0
    // Predicated region
    $region2: #{mentornet_forward.1} parent=1 // pred_check
      _
    $region3: #{mentornet_forward.1} parent=1 // pred_check_branch
      %10 = sbr.rel (0) target = $region5
    $region4: #{mentornet_forward.1} parent=1 // pred_region
      %12 = vsyncadd [#allocation3], 0
      %s14 = sshll.u32 %s0, 4
      %s15 = int_to_ptr.vmem [resolvable:$true] %s14
      %17 = dma.vmem_to_smem %s15, 16, [#allocation2], [#allocation3]
    $region5: #{mentornet_forward.1} parent=1 // pred_fallthru
      _
    // Predicated region
    $region6: #{mentornet_forward.1} parent=1 // pred_check
      _
    $region7: #{mentornet_forward.1} parent=1 // pred_check_branch
      %19 = sbr.rel (0) target = $region9
    $region8: #{mentornet_forward.1} parent=1 // pred_region
      _
    $region9: #{mentornet_forward.1} parent=1 // pred_fallthru
      _
    // Predicated region
    $region10: #{mentornet_forward.1} parent=1 // pred_check
      _
    $region11: #{mentornet_forward.1} parent=1 // pred_check_branch
      %21 = sbr.rel (0) target = $region13
    $region12: #{mentornet_forward.1} parent=1 // pred_region
      _
    $region13: #{mentornet_forward.1} parent=1 // pred_fallthru
      _
    // Predicated region
    $region14: #{mentornet_forward.1} parent=1 // pred_check
      _
    $region15: #{mentornet_forward.1} parent=1 // pred_check_branch
      %23 = sbr.rel (0) target = $region17
    $region16: #{mentornet_forward.1} parent=1 // pred_region
      %25 = dma.done [#allocation3], 16
    $region17: #{mentornet_forward.1} parent=1 // pred_fallthru
      _
    %26 = sfence
    %v27 = vld [vmem:[%s1] sm:$0x1]
    %v28 = vld [vmem:[%s1 + $0x1] sm:$0x1]
    %v29 = vld [vmem:[%s1 + $0x2] sm:$0x1]
    %v30 = vld [vmem:[%s2] sm:$0xff]
    %v31 = vld [vmem:[%s2 + $0x8] sm:$0xff]
    %v32 = vld [vmem:[%s2 + $0x10] sm:$0xf]
    %s33 = sld [smem:[#allocation2]]
    %v34 = vstv %s33
    %v35 = vmul.f32 %v34, %v27
    %s36 = sld [smem:[#allocation2 + $0x1]]
    %v37 = vstv %s36
    %v38 = vmul.f32 %v37, %v28
    %v39 = vadd.f32 %v35, %v38
    %s40 = sld [smem:[#allocation2 + $0x2]]
    %v41 = vstv %s40
    %v42 = vadd.f32 %v39, %v41
    %v43 = vtanh.pop %v42
    %s44 = sld [smem:[#allocation2 + $0x3]]
    %v45 = vstv %s44
    %v46 = vmul.f32 %v45, %v27
    %s47 = sld [smem:[#allocation2 + $0x4]]
    %v48 = vstv %s47
    %v49 = vmul.f32 %v48, %v28
    %v50 = vadd.f32 %v46, %v49
    %s51 = sld [smem:[#allocation2 + $0x5]]
    %v52 = vstv %s51
    %v53 = vadd.f32 %v50, %v52
    %v54 = vtanh.pop %v53
    %56 = vset.pattern.permute.xlu0 3
    %57 = vperm.xlu0 %56, %v30
    %v58 = vpop.permute.xlu0 %57
    %61 = vset.pattern.permute.xlu0 3
    %62 = vperm.xlu0 %61, %v31
    %v63 = vpop.permute.xlu0 %62
    %66 = vset.pattern.permute.xlu0 3
    %67 = vperm.xlu0 %66, %v32
    %v68 = vpop.permute.xlu0 %67
    %v70 = vperm.slane %v43, 0
    %v71 = vmul.f32 %v58, %v70
    %v72 = vmul.f32 %v63, %v70
    %v73 = vmul.f32 %v68, %v70
    %74 = vset.pattern.permute.xlu0 4
    %75 = vperm.xlu0 %74, %v30
    %v76 = vpop.permute.xlu0 %75
    %78 = vset.pattern.permute.xlu0 4
    %79 = vperm.xlu0 %78, %v31
    %v80 = vpop.permute.xlu0 %79
    %82 = vset.pattern.permute.xlu0 4
    %83 = vperm.xlu0 %82, %v32
    %v84 = vpop.permute.xlu0 %83
    %v86 = vperm.slane %v54, 0
    %v87 = vmul.f32 %v76, %v86
    %v88 = vmul.f32 %v80, %v86
    %v89 = vmul.f32 %v84, %v86
    %v90 = vadd.f32 %v71, %v87
    %v91 = vadd.f32 %v72, %v88
    %v92 = vadd.f32 %v73, %v89
    %93 = vset.pattern.permute.xlu0 0
    %94 = vperm.xlu0 %93, %v30
    %v95 = vpop.permute.xlu0 %94
    %97 = vset.pattern.permute.xlu0 0
    %98 = vperm.xlu0 %97, %v31
    %v99 = vpop.permute.xlu0 %98
    %101 = vset.pattern.permute.xlu0 0
    %102 = vperm.xlu0 %101, %v32
    %v103 = vpop.permute.xlu0 %102
    %v105 = vperm.slane %v29, 0
    %v106 = vmul.f32 %v95, %v105
    %v107 = vmul.f32 %v99, %v105
    %v108 = vmul.f32 %v103, %v105
    %v109 = vadd.f32 %v90, %v106
    %v110 = vadd.f32 %v91, %v107
    %v111 = vadd.f32 %v92, %v108
    %112 = vset.pattern.permute.xlu0 1
    %113 = vperm.xlu0 %112, %v30
    %v114 = vpop.permute.xlu0 %113
    %116 = vset.pattern.permute.xlu0 1
    %117 = vperm.xlu0 %116, %v31
    %v118 = vpop.permute.xlu0 %117
    %120 = vset.pattern.permute.xlu0 1
    %121 = vperm.xlu0 %120, %v32
    %v122 = vpop.permute.xlu0 %121
    %v124 = vadd.f32 %v109, %v114
    %v125 = vadd.f32 %v110, %v118
    %v126 = vadd.f32 %v111, %v122
    %v127 = vtanh.pop %v124
    %v128 = vtanh.pop %v125
    %v129 = vtanh.pop %v126
    %130 = vset.pattern.permute.xlu0 2
    %131 = vperm.xlu0 %130, %v30
    %v132 = vpop.permute.xlu0 %131
    %134 = vset.pattern.permute.xlu0 2
    %135 = vperm.xlu0 %134, %v31
    %v136 = vpop.permute.xlu0 %135
    %138 = vset.pattern.permute.xlu0 2
    %139 = vperm.xlu0 %138, %v32
    %v140 = vpop.permute.xlu0 %139
    %v142 = vmul.f32 %v132, %v127
    %v143 = vmul.f32 %v136, %v128
    %v144 = vmul.f32 %v140, %v129
    %v145 = vadd.f32 %v142, %v143
    %vm146 = vcmask 1043456
    %v147 = vsel %vm146, %v144, 0.0
    %v148 = vadd.f32 %v145, %v147
    %v149 = vrot.slane %v148, 4
    %v150 = vadd.f32 %v148, %v149
    %v151 = vrot.slane %v150, 2
    %v152 = vadd.f32 %v150, %v151
    %v153 = vrot.slane %v152, 1
    %v154 = vadd.f32 %v152, %v153
    %s155 = sld [smem:[#allocation2 + $0x6]]
    %v156 = vstv %s155
    %v157 = vadd.f32 %v154, %v156
    %v158 = vmul.f32 %v157, 0.5
    %v159 = vtanh.pop %v158
    %v160 = vadd.f32 %v159, 1.0
    %v161 = vmul.f32 %v160, 0.5
    %162 = vst [vmem:[%s3] sm:$0x1] %v161
    // Predicated region
    $region18: #{mentornet_forward.1} parent=1 // pred_check
      _
    $region19: #{mentornet_forward.1} parent=1 // pred_check_branch
      %164 = sbr.rel (0) target = $region21
    $region20: #{mentornet_forward.1} parent=1 // pred_region
      _
    $region21: #{mentornet_forward.1} parent=1 // pred_fallthru
      _
    // Predicated region
    $region22: #{mentornet_forward.1} parent=1 // pred_check
      _
    $region23: #{mentornet_forward.1} parent=1 // pred_check_branch
      %166 = sbr.rel (0) target = $region25
    $region24: #{mentornet_forward.1} parent=1 // pred_region
      _
    $region25: #{mentornet_forward.1} parent=1 // pred_fallthru
      _
    %167 = vsyncpa [#allocation3], 1

</llo_original>
